<compile_context>
chip_gen: v6e
topology: v6e:2x2x1
jax: 0.10.0
libtpu: 0.0.40
codegen_flags: <defaults>
</compile_context>

<pallas_src>
from functools import partial

import jax
import jax.numpy as jnp
from jax import lax
from jax.experimental import pallas as pl
from jax.experimental.pallas import tpu as pltpu

HIDDEN_DIM = 64
IN_DIM = 4      # encoder input / decoder input / decoder output
ENC_OUT = 2     # encoder output (latent momenta p_hat)


def _round_up(n, m):
    return ((n + m - 1) // m) * m


def _choose_tile(n, tile_n):
    """Row tile: as large as possible, but >=2 grid steps on large inputs so
    the single 'parallel' grid axis shards across both v7x TensorCores."""
    if n <= max(tile_n, 8):
        return n                               # one full-extent block (always legal)
    t = _round_up(tile_n, 8)
    t = min(t, _round_up((n + 1) // 2, 8))     # guarantees >= 2 grid steps
    return t


# ----------------------------------------------------------------------------
# Kernel: one (tile, 4) row-block -> encoder -> latent restack -> decoder.
# Weights arrive (in, out) in bf16; biases (1, out) in f32.
# ----------------------------------------------------------------------------
def autoencoder_kernel(x_ref,
                       w1e_ref, b1e_ref, whe_ref, bhe_ref, w2e_ref, b2e_ref,
                       w1d_ref, b1d_ref, whd_ref, bhd_ref, w2d_ref, b2d_ref,
                       z_ref, xhat_ref, *, act_dtype):
    xf = x_ref[...].astype(jnp.float32)                  # (T, 4) — kept f32 for z passthrough

    def dense(h, w_ref, b_ref):
        # bf16 x bf16 MXU matmul with f32 accumulation + f32 bias.
        return jnp.dot(h.astype(jnp.bfloat16), w_ref[...],
                       preferred_element_type=jnp.float32) + b_ref[...]

    # ----- encoder: fc1 -> tanh -> hidden(tanh) -> fc2 (lane-scattered) -----
    h = jnp.tanh(dense(xf, w1e_ref, b1e_ref).astype(act_dtype))     # (T, 64)
    h = jnp.tanh(dense(h, whe_ref, bhe_ref).astype(act_dtype))      # (T, 64)
    p_scat = dense(h, w2e_ref, b2e_ref)                  # (T, 4): p_hat already in lanes 1,3

    # ----- latent restack: z = [q1, p_hat0, q2, p_hat1] (single select) -----
    lane = lax.broadcasted_iota(jnp.int32, p_scat.shape, 1)
    z = jnp.where(lane % 2 == 0, xf, p_scat)             # (T, 4) f32, q1/q2 exact

    # ----- decoder: fc1 -> tanh -> hidden(tanh) -> fc2 -----
    g = jnp.tanh(dense(z, w1d_ref, b1d_ref).astype(act_dtype))      # (T, 64)
    g = jnp.tanh(dense(g, whd_ref, bhd_ref).astype(act_dtype))      # (T, 64)
    x_hat = dense(g, w2d_ref, b2d_ref)                   # (T, 4) f32

    z_ref[...] = z.astype(z_ref.dtype)
    xhat_ref[...] = x_hat.astype(xhat_ref.dtype)


# ----------------------------------------------------------------------------
# Wrapper
# ----------------------------------------------------------------------------
@partial(jax.jit, static_argnames=("tile_n", "out_dtype", "act_dtype"))
def autoencoder_forward(x, params, *, tile_n=2048,
                        out_dtype=jnp.float32, act_dtype=jnp.bfloat16):
    """x: (B, T, 4). Returns (z, x_hat), each (B, T, 4) in out_dtype.

    act_dtype: dtype the tanh layers run in (bf16 for v6e/v7x; use f32 on v5e).
    """
    B, T, F = x.shape
    assert F == IN_DIM
    N = B * T
    x2 = x.reshape(N, F)           # contiguous reshape — no HBM layout pass

    f32, bf16 = jnp.float32, jnp.bfloat16

    def wt(w):   # PyTorch (out, in) -> (in, out), bf16 for the MXU
        return w.T.astype(bf16)

    def bt(b):   # (out, 1) -> (1, out), f32
        return b.reshape(1, -1).astype(f32)

    # Scatter encoder fc2 so p_hat lands in lanes {1, 3} of a (tile, 4) slab.
    w2e = params["enc_w2"]                                 # (2, 64)
    b2e = params["enc_b2"].reshape(-1)                     # (2,)
    w2e_scat = jnp.zeros((HIDDEN_DIM, IN_DIM), f32)
    w2e_scat = w2e_scat.at[:, 1].set(w2e[0]).at[:, 3].set(w2e[1]).astype(bf16)
    b2e_scat = jnp.zeros((1, IN_DIM), f32).at[0, 1].set(b2e[0]).at[0, 3].set(b2e[1])

    weights = (
        wt(params["enc_w1"]), bt(params["enc_b1"]),
        wt(params["enc_wh"]), bt(params["enc_bh"]),
        w2e_scat, b2e_scat,
        wt(params["dec_w1"]), bt(params["dec_b1"]),
        wt(params["dec_wh"]), bt(params["dec_bh"]),
        wt(params["dec_w2"]), bt(params["dec_b2"]),
    )

    tile = _choose_tile(N, tile_n)
    grid = (pl.cdiv(N, tile),)      # ragged last block: reads padded, writes clipped

    io_spec = pl.BlockSpec((tile, F), lambda i: (i, 0))
    # Whole (tiny) weight arrays with constant index maps -> VMEM resident.
    w_specs = [pl.BlockSpec(w.shape, lambda i: (0, 0)) for w in weights]

    z2, xh2 = pl.pallas_call(
        partial(autoencoder_kernel, act_dtype=act_dtype),
        out_shape=(jax.ShapeDtypeStruct((N, F), out_dtype),
                   jax.ShapeDtypeStruct((N, F), out_dtype)),
        grid_spec=pltpu.PrefetchScalarGridSpec(
            num_scalar_prefetch=0,
            grid=grid,
            in_specs=[io_spec] + w_specs,
            out_specs=(io_spec, io_spec),
        ),
        compiler_params=pltpu.CompilerParams(
            dimension_semantics=("parallel",)),
    )(x2, *weights)

    return z2.reshape(B, T, F), xh2.reshape(B, T, F)


# ----------------------------------------------------------------------------
# Deterministic parameter init (PyTorch Linear-style: W (out, in), b (out, 1))
# ----------------------------------------------------------------------------
def init_params(key):
    def linear(k, fan_in, fan_out):
        k1, k2 = jax.random.split(k)
        bound = float(fan_in) ** -0.5
        w = jax.random.uniform(k1, (fan_out, fan_in), jnp.float32, -bound, bound)
        b = jax.random.uniform(k2, (fan_out, 1), jnp.float32, -bound, bound)
        return w, b

    keys = jax.random.split(key, 6)
    p = {}
    p["enc_w1"], p["enc_b1"] = linear(keys[0], IN_DIM, HIDDEN_DIM)
    p["enc_wh"], p["enc_bh"] = linear(keys[1], HIDDEN_DIM, HIDDEN_DIM)
    p["enc_w2"], p["enc_b2"] = linear(keys[2], HIDDEN_DIM, ENC_OUT)
    p["dec_w1"], p["dec_b1"] = linear(keys[3], IN_DIM, HIDDEN_DIM)
    p["dec_wh"], p["dec_bh"] = linear(keys[4], HIDDEN_DIM, HIDDEN_DIM)
    p["dec_w2"], p["dec_b2"] = linear(keys[5], HIDDEN_DIM, IN_DIM)
    return p


# ----------------------------------------------------------------------------
# Pure-JAX reference (mirrors the PyTorch forward)
# ----------------------------------------------------------------------------
def reference_forward(x, p):
    def mlp(h, w1, b1, wh, bh, w2, b2):
        h = jnp.tanh(h @ w1.T + b1.T)
        h = jnp.tanh(h @ wh.T + bh.T)
        return h @ w2.T + b2.T

    p_hat = mlp(x, p["enc_w1"], p["enc_b1"], p["enc_wh"], p["enc_bh"],
                p["enc_w2"], p["enc_b2"])
    z = jnp.stack((x[..., 0], p_hat[..., 0], x[..., 2], p_hat[..., 1]), axis=-1)
    x_hat = mlp(z, p["dec_w1"], p["dec_b1"], p["dec_wh"], p["dec_bh"],
                p["dec_w2"], p["dec_b2"])
    return z, x_hat


if __name__ == "__main__":
    key = jax.random.PRNGKey(0)
    k_param, k_x = jax.random.split(key)

    params = init_params(k_param)
    B, T = 2, 8
    x = jax.random.normal(k_x, (B, T, IN_DIM), jnp.float32)

    z, x_hat = autoencoder_forward(x, params)
    jax.block_until_ready((z, x_hat))

    # Reference with the same bf16-rounded weights the kernel feeds the MXU
    # (the kernel accumulates in f32; remaining delta is bf16 activation
    # rounding, well under the tolerances below).
    params_q = {k: (v.astype(jnp.bfloat16).astype(jnp.float32) if "_w" in k else v)
                for k, v in params.items()}
    z_ref, xhat_ref = reference_forward(x, params_q)

    assert z.shape == (B, T, IN_DIM) and x_hat.shape == (B, T, IN_DIM)
    # q1 / q2 pass through the latent restack exactly (f32 select, no recompute)
    assert jnp.allclose(z[..., 0], x[..., 0], atol=0.0)
    assert jnp.allclose(z[..., 2], x[..., 2], atol=0.0)
    assert jnp.allclose(z, z_ref, atol=5e-2, rtol=5e-2)
    assert jnp.allclose(x_hat, xhat_ref, atol=5e-2, rtol=5e-2)

    print("KERNEL_OK")
</pallas_src>

<mosaic_0001>
module attributes {stable_mosaic.version = 11 : i64} {
  func.func @autoencoder_kernel(%arg0: i32, %arg1: memref<16x4xf32, #tpu.memory_space<vmem>>, %arg2: memref<4x64xbf16, #tpu.memory_space<vmem>>, %arg3: memref<1x64xf32, #tpu.memory_space<vmem>>, %arg4: memref<64x64xbf16, #tpu.memory_space<vmem>>, %arg5: memref<1x64xf32, #tpu.memory_space<vmem>>, %arg6: memref<64x4xbf16, #tpu.memory_space<vmem>>, %arg7: memref<1x4xf32, #tpu.memory_space<vmem>>, %arg8: memref<4x64xbf16, #tpu.memory_space<vmem>>, %arg9: memref<1x64xf32, #tpu.memory_space<vmem>>, %arg10: memref<64x64xbf16, #tpu.memory_space<vmem>>, %arg11: memref<1x64xf32, #tpu.memory_space<vmem>>, %arg12: memref<64x4xbf16, #tpu.memory_space<vmem>>, %arg13: memref<1x4xf32, #tpu.memory_space<vmem>>, %arg14: memref<16x4xf32, #tpu.memory_space<vmem>>, %arg15: memref<16x4xf32, #tpu.memory_space<vmem>>) attributes {dimension_semantics = [#tpu.dimension_semantics<parallel>], iteration_bounds = array<i64: 1>, scalar_prefetch = 0 : i64, scratch_operands = 0 : i64, tpu.core_type = #tpu.core_type<tc>, window_params = [{transform_indices = @transform_0, window_bounds = array<i64: 16, 4>}, {pipeline_mode = #tpu.pipeline_mode<synchronous>, transform_indices = @transform_1, window_bounds = array<i64: 4, 64>}, {pipeline_mode = #tpu.pipeline_mode<synchronous>, transform_indices = @transform_2, window_bounds = array<i64: 1, 64>}, {pipeline_mode = #tpu.pipeline_mode<synchronous>, transform_indices = @transform_3, window_bounds = array<i64: 64, 64>}, {pipeline_mode = #tpu.pipeline_mode<synchronous>, transform_indices = @transform_4, window_bounds = array<i64: 1, 64>}, {pipeline_mode = #tpu.pipeline_mode<synchronous>, transform_indices = @transform_5, window_bounds = array<i64: 64, 4>}, {pipeline_mode = #tpu.pipeline_mode<synchronous>, transform_indices = @transform_6, window_bounds = array<i64: 1, 4>}, {pipeline_mode = #tpu.pipeline_mode<synchronous>, transform_indices = @transform_7, window_bounds = array<i64: 4, 64>}, {pipeline_mode = #tpu.pipeline_mode<synchronous>, transform_indices = @transform_8, window_bounds = array<i64: 1, 64>}, {pipeline_mode = #tpu.pipeline_mode<synchronous>, transform_indices = @transform_9, window_bounds = array<i64: 64, 64>}, {pipeline_mode = #tpu.pipeline_mode<synchronous>, transform_indices = @transform_10, window_bounds = array<i64: 1, 64>}, {pipeline_mode = #tpu.pipeline_mode<synchronous>, transform_indices = @transform_11, window_bounds = array<i64: 64, 4>}, {pipeline_mode = #tpu.pipeline_mode<synchronous>, transform_indices = @transform_12, window_bounds = array<i64: 1, 4>}, {transform_indices = @transform_13, window_bounds = array<i64: 16, 4>}, {transform_indices = @transform_14, window_bounds = array<i64: 16, 4>}]} {
    %c0 = arith.constant 0 : index
    %c0_0 = arith.constant 0 : index
    %0 = vector.load %arg1[%c0, %c0_0] : memref<16x4xf32, #tpu.memory_space<vmem>>, vector<16x4xf32>
    %1 = arith.truncf %0 : vector<16x4xf32> to vector<16x4xbf16>
    %c0_1 = arith.constant 0 : index
    %c0_2 = arith.constant 0 : index
    %2 = vector.load %arg2[%c0_1, %c0_2] : memref<4x64xbf16, #tpu.memory_space<vmem>>, vector<4x64xbf16>
    %cst = arith.constant dense<0.000000e+00> : vector<16x64xf32>
    %3 = tpu.matmul %1, %2, %cst {dimension_numbers = #tpu.dot_dimension_numbers<[1], [0], [0], [1], [0, 0, 1, 1], [], []>} : vector<16x4xbf16>, vector<4x64xbf16>, vector<16x64xf32> -> vector<16x64xf32>
    %c0_3 = arith.constant 0 : index
    %c0_4 = arith.constant 0 : index
    %4 = vector.load %arg3[%c0_3, %c0_4] : memref<1x64xf32, #tpu.memory_space<vmem>>, vector<1x64xf32>
    %5 = vector.broadcast %4 : vector<1x64xf32> to vector<16x64xf32>
    %6 = arith.addf %3, %5 : vector<16x64xf32>
    %7 = arith.truncf %6 : vector<16x64xf32> to vector<16x64xbf16>
    %8 = math.tanh %7 : vector<16x64xbf16>
    %c0_5 = arith.constant 0 : index
    %c0_6 = arith.constant 0 : index
    %9 = vector.load %arg4[%c0_5, %c0_6] : memref<64x64xbf16, #tpu.memory_space<vmem>>, vector<64x64xbf16>
    %cst_7 = arith.constant dense<0.000000e+00> : vector<16x64xf32>
    %10 = tpu.matmul %8, %9, %cst_7 {dimension_numbers = #tpu.dot_dimension_numbers<[1], [0], [0], [1], [0, 0, 1, 1], [], []>} : vector<16x64xbf16>, vector<64x64xbf16>, vector<16x64xf32> -> vector<16x64xf32>
    %c0_8 = arith.constant 0 : index
    %c0_9 = arith.constant 0 : index
    %11 = vector.load %arg5[%c0_8, %c0_9] : memref<1x64xf32, #tpu.memory_space<vmem>>, vector<1x64xf32>
    %12 = vector.broadcast %11 : vector<1x64xf32> to vector<16x64xf32>
    %13 = arith.addf %10, %12 : vector<16x64xf32>
    %14 = arith.truncf %13 : vector<16x64xf32> to vector<16x64xbf16>
    %15 = math.tanh %14 : vector<16x64xbf16>
    %c0_10 = arith.constant 0 : index
    %c0_11 = arith.constant 0 : index
    %16 = vector.load %arg6[%c0_10, %c0_11] : memref<64x4xbf16, #tpu.memory_space<vmem>>, vector<64x4xbf16>
    %cst_12 = arith.constant dense<0.000000e+00> : vector<16x4xf32>
    %17 = tpu.matmul %15, %16, %cst_12 {dimension_numbers = #tpu.dot_dimension_numbers<[1], [0], [0], [1], [0, 0, 1, 1], [], []>} : vector<16x64xbf16>, vector<64x4xbf16>, vector<16x4xf32> -> vector<16x4xf32>
    %c0_13 = arith.constant 0 : index
    %c0_14 = arith.constant 0 : index
    %18 = vector.load %arg7[%c0_13, %c0_14] : memref<1x4xf32, #tpu.memory_space<vmem>>, vector<1x4xf32>
    %19 = vector.broadcast %18 : vector<1x4xf32> to vector<16x4xf32>
    %20 = arith.addf %17, %19 : vector<16x4xf32>
    %21 = tpu.iota {dimensions = array<i32: 1>} : vector<16x4xi32>
    %c2_i32 = arith.constant 2 : i32
    %c0_i32 = arith.constant 0 : i32
    %22 = arith.cmpi eq, %c2_i32, %c0_i32 : i32
    %c1_i32 = arith.constant 1 : i32
    %23 = arith.select %22, %c1_i32, %c2_i32 : i32
    %24 = vector.broadcast %23 : i32 to vector<16x4xi32>
    %25 = arith.remsi %21, %24 : vector<16x4xi32>
    %c0_i32_15 = arith.constant 0 : i32
    %26 = vector.broadcast %c0_i32_15 : i32 to vector<16x4xi32>
    %27 = arith.cmpi ne, %25, %26 : vector<16x4xi32>
    %c0_i32_16 = arith.constant 0 : i32
    %28 = vector.broadcast %c0_i32_16 : i32 to vector<16x4xi32>
    %29 = arith.cmpi slt, %25, %28 : vector<16x4xi32>
    %c0_i32_17 = arith.constant 0 : i32
    %30 = arith.cmpi slt, %23, %c0_i32_17 : i32
    %31 = vector.broadcast %30 : i1 to vector<16x4xi1>
    %32 = vector.broadcast %31 : vector<16x4xi1> to vector<16x4xi1>
    %33 = arith.xori %29, %32 : vector<16x4xi1>
    %34 = arith.andi %33, %27 : vector<16x4xi1>
    %35 = vector.broadcast %23 : i32 to vector<16x4xi32>
    %36 = arith.addi %25, %35 : vector<16x4xi32>
    %37 = arith.select %34, %36, %25 : vector<16x4xi1>, vector<16x4xi32>
    %c0_i32_18 = arith.constant 0 : i32
    %38 = vector.broadcast %c0_i32_18 : i32 to vector<16x4xi32>
    %39 = arith.cmpi eq, %37, %38 : vector<16x4xi32>
    %40 = arith.select %39, %0, %20 : vector<16x4xi1>, vector<16x4xf32>
    %41 = arith.truncf %40 : vector<16x4xf32> to vector<16x4xbf16>
    %c0_19 = arith.constant 0 : index
    %c0_20 = arith.constant 0 : index
    %42 = vector.load %arg8[%c0_19, %c0_20] : memref<4x64xbf16, #tpu.memory_space<vmem>>, vector<4x64xbf16>
    %cst_21 = arith.constant dense<0.000000e+00> : vector<16x64xf32>
    %43 = tpu.matmul %41, %42, %cst_21 {dimension_numbers = #tpu.dot_dimension_numbers<[1], [0], [0], [1], [0, 0, 1, 1], [], []>} : vector<16x4xbf16>, vector<4x64xbf16>, vector<16x64xf32> -> vector<16x64xf32>
    %c0_22 = arith.constant 0 : index
    %c0_23 = arith.constant 0 : index
    %44 = vector.load %arg9[%c0_22, %c0_23] : memref<1x64xf32, #tpu.memory_space<vmem>>, vector<1x64xf32>
    %45 = vector.broadcast %44 : vector<1x64xf32> to vector<16x64xf32>
    %46 = arith.addf %43, %45 : vector<16x64xf32>
    %47 = arith.truncf %46 : vector<16x64xf32> to vector<16x64xbf16>
    %48 = math.tanh %47 : vector<16x64xbf16>
    %c0_24 = arith.constant 0 : index
    %c0_25 = arith.constant 0 : index
    %49 = vector.load %arg10[%c0_24, %c0_25] : memref<64x64xbf16, #tpu.memory_space<vmem>>, vector<64x64xbf16>
    %cst_26 = arith.constant dense<0.000000e+00> : vector<16x64xf32>
    %50 = tpu.matmul %48, %49, %cst_26 {dimension_numbers = #tpu.dot_dimension_numbers<[1], [0], [0], [1], [0, 0, 1, 1], [], []>} : vector<16x64xbf16>, vector<64x64xbf16>, vector<16x64xf32> -> vector<16x64xf32>
    %c0_27 = arith.constant 0 : index
    %c0_28 = arith.constant 0 : index
    %51 = vector.load %arg11[%c0_27, %c0_28] : memref<1x64xf32, #tpu.memory_space<vmem>>, vector<1x64xf32>
    %52 = vector.broadcast %51 : vector<1x64xf32> to vector<16x64xf32>
    %53 = arith.addf %50, %52 : vector<16x64xf32>
    %54 = arith.truncf %53 : vector<16x64xf32> to vector<16x64xbf16>
    %55 = math.tanh %54 : vector<16x64xbf16>
    %c0_29 = arith.constant 0 : index
    %c0_30 = arith.constant 0 : index
    %56 = vector.load %arg12[%c0_29, %c0_30] : memref<64x4xbf16, #tpu.memory_space<vmem>>, vector<64x4xbf16>
    %cst_31 = arith.constant dense<0.000000e+00> : vector<16x4xf32>
    %57 = tpu.matmul %55, %56, %cst_31 {dimension_numbers = #tpu.dot_dimension_numbers<[1], [0], [0], [1], [0, 0, 1, 1], [], []>} : vector<16x64xbf16>, vector<64x4xbf16>, vector<16x4xf32> -> vector<16x4xf32>
    %c0_32 = arith.constant 0 : index
    %c0_33 = arith.constant 0 : index
    %58 = vector.load %arg13[%c0_32, %c0_33] : memref<1x4xf32, #tpu.memory_space<vmem>>, vector<1x4xf32>
    %59 = vector.broadcast %58 : vector<1x4xf32> to vector<16x4xf32>
    %60 = arith.addf %57, %59 : vector<16x4xf32>
    %c0_34 = arith.constant 0 : index
    %c0_35 = arith.constant 0 : index
    %61 = vector.load %arg14[%c0_34, %c0_35] : memref<16x4xf32, #tpu.memory_space<vmem>>, vector<16x4xf32>
    tpu.vector_store %arg14[%c0_34, %c0_35], %40 {strides = array<i32>} : memref<16x4xf32, #tpu.memory_space<vmem>>, vector<16x4xf32>,
    %c0_36 = arith.constant 0 : index
    %c0_37 = arith.constant 0 : index
    %62 = vector.load %arg15[%c0_36, %c0_37] : memref<16x4xf32, #tpu.memory_space<vmem>>, vector<16x4xf32>
    tpu.vector_store %arg15[%c0_36, %c0_37], %60 {strides = array<i32>} : memref<16x4xf32, #tpu.memory_space<vmem>>, vector<16x4xf32>,
    return
  }
  func.func @transform_0(%arg0: i32) -> (i32, i32) {
    %c0_i32 = arith.constant 0 : i32
    %c0_i32_0 = arith.constant 0 : i32
    return %arg0, %c0_i32 : i32, i32
  }
  func.func @transform_1(%arg0: i32) -> (i32, i32) {
    %c0_i32 = arith.constant 0 : i32
    %c0_i32_0 = arith.constant 0 : i32
    %c0_i32_1 = arith.constant 0 : i32
    return %c0_i32, %c0_i32_0 : i32, i32
  }
  func.func @transform_2(%arg0: i32) -> (i32, i32) {
    %c0_i32 = arith.constant 0 : i32
    %c0_i32_0 = arith.constant 0 : i32
    %c0_i32_1 = arith.constant 0 : i32
    return %c0_i32, %c0_i32_0 : i32, i32
  }
  func.func @transform_3(%arg0: i32) -> (i32, i32) {
    %c0_i32 = arith.constant 0 : i32
    %c0_i32_0 = arith.constant 0 : i32
    %c0_i32_1 = arith.constant 0 : i32
    return %c0_i32, %c0_i32_0 : i32, i32
  }
  func.func @transform_4(%arg0: i32) -> (i32, i32) {
    %c0_i32 = arith.constant 0 : i32
    %c0_i32_0 = arith.constant 0 : i32
    %c0_i32_1 = arith.constant 0 : i32
    return %c0_i32, %c0_i32_0 : i32, i32
  }
  func.func @transform_5(%arg0: i32) -> (i32, i32) {
    %c0_i32 = arith.constant 0 : i32
    %c0_i32_0 = arith.constant 0 : i32
    %c0_i32_1 = arith.constant 0 : i32
    return %c0_i32, %c0_i32_0 : i32, i32
  }
  func.func @transform_6(%arg0: i32) -> (i32, i32) {
    %c0_i32 = arith.constant 0 : i32
    %c0_i32_0 = arith.constant 0 : i32
    %c0_i32_1 = arith.constant 0 : i32
    return %c0_i32, %c0_i32_0 : i32, i32
  }
  func.func @transform_7(%arg0: i32) -> (i32, i32) {
    %c0_i32 = arith.constant 0 : i32
    %c0_i32_0 = arith.constant 0 : i32
    %c0_i32_1 = arith.constant 0 : i32
    return %c0_i32, %c0_i32_0 : i32, i32
  }
  func.func @transform_8(%arg0: i32) -> (i32, i32) {
    %c0_i32 = arith.constant 0 : i32
    %c0_i32_0 = arith.constant 0 : i32
    %c0_i32_1 = arith.constant 0 : i32
    return %c0_i32, %c0_i32_0 : i32, i32
  }
  func.func @transform_9(%arg0: i32) -> (i32, i32) {
    %c0_i32 = arith.constant 0 : i32
    %c0_i32_0 = arith.constant 0 : i32
    %c0_i32_1 = arith.constant 0 : i32
    return %c0_i32, %c0_i32_0 : i32, i32
  }
  func.func @transform_10(%arg0: i32) -> (i32, i32) {
    %c0_i32 = arith.constant 0 : i32
    %c0_i32_0 = arith.constant 0 : i32
    %c0_i32_1 = arith.constant 0 : i32
    return %c0_i32, %c0_i32_0 : i32, i32
  }
  func.func @transform_11(%arg0: i32) -> (i32, i32) {
    %c0_i32 = arith.constant 0 : i32
    %c0_i32_0 = arith.constant 0 : i32
    %c0_i32_1 = arith.constant 0 : i32
    return %c0_i32, %c0_i32_0 : i32, i32
  }
  func.func @transform_12(%arg0: i32) -> (i32, i32) {
    %c0_i32 = arith.constant 0 : i32
    %c0_i32_0 = arith.constant 0 : i32
    %c0_i32_1 = arith.constant 0 : i32
    return %c0_i32, %c0_i32_0 : i32, i32
  }
  func.func @transform_13(%arg0: i32) -> (i32, i32) {
    %c0_i32 = arith.constant 0 : i32
    %c0_i32_0 = arith.constant 0 : i32
    return %arg0, %c0_i32 : i32, i32
  }
  func.func @transform_14(%arg0: i32) -> (i32, i32) {
    %c0_i32 = arith.constant 0 : i32
    %c0_i32_0 = arith.constant 0 : i32
    return %arg0, %c0_i32 : i32, i32
  }
}

</mosaic_0001>

<llo_original>
// kernel: autoencoder_forward.1
$region0: #{autoencoder_forward.1}
  #allocation0 [shape = 'u32[]', space=smem, size = 0x4, offset = 0x4, fixed_abs, tag = 'smem constant byte address 0x4 - core index']
  #allocation1 [shape = 'u32[144,128]{1,0:T(1,128)}', space=vmem, size = 0x12000, scoped, tag = 'internal scratch']
  %s0 = inlined_call_operand.vmem [shape: f32[16,4], index: 0, kind: input, shape index: {}]
  %s1 = inlined_call_operand.vmem [shape: bf16[4,64], index: 1, kind: input, shape index: {}]
  %s2 = inlined_call_operand.vmem [shape: f32[1,64], index: 2, kind: input, shape index: {}]
  %s3 = inlined_call_operand.vmem [shape: bf16[64,64], index: 3, kind: input, shape index: {}]
  %s4 = inlined_call_operand.vmem [shape: f32[1,64], index: 4, kind: input, shape index: {}]
  %s5 = inlined_call_operand.vmem [shape: bf16[64,4], index: 5, kind: input, shape index: {}]
  %s6 = inlined_call_operand.vmem [shape: f32[1,4], index: 6, kind: input, shape index: {}]
  %s7 = inlined_call_operand.vmem [shape: bf16[4,64], index: 7, kind: input, shape index: {}]
  %s8 = inlined_call_operand.vmem [shape: f32[1,64], index: 8, kind: input, shape index: {}]
  %s9 = inlined_call_operand.vmem [shape: bf16[64,64], index: 9, kind: input, shape index: {}]
  %s10 = inlined_call_operand.vmem [shape: f32[1,64], index: 10, kind: input, shape index: {}]
  %s11 = inlined_call_operand.vmem [shape: bf16[64,4], index: 11, kind: input, shape index: {}]
  %s12 = inlined_call_operand.vmem [shape: f32[1,4], index: 12, kind: input, shape index: {}]
  %s13 = inlined_call_operand.vmem [shape: f32[16,4], index: 13, kind: output, shape index: {0}]
  %s14 = inlined_call_operand.vmem [shape: f32[16,4], index: 14, kind: output, shape index: {1}]
  %15 = xla_tuple %s13, %s14
  %s16 = sld [smem:[#allocation0]]
  $region70: #{autoencoder_forward.1} parent=0
    _
  %s18 = ssub.s32 1, %s16
  %s19 = scalar_select 0, %s18, %s16
  // Predicated region
  $region2: #{autoencoder_forward.1} parent=0 // pred_check
    _
  $region3: #{autoencoder_forward.1} parent=0 // pred_check_branch
    %21 = sbr.rel (0) target = $region5
  $region4: #{autoencoder_forward.1} parent=0 // pred_region
    _
  $region5: #{autoencoder_forward.1} parent=0 // pred_fallthru
    _
  // Predicated region
  $region6: #{autoencoder_forward.1} parent=0 // pred_check
    _
  $region7: #{autoencoder_forward.1} parent=0 // pred_check_branch
    %23 = sbr.rel (0) target = $region9
  $region8: #{autoencoder_forward.1} parent=0 // pred_region
    _
  $region9: #{autoencoder_forward.1} parent=0 // pred_fallthru
    _
  // Predicated region
  $region10: #{autoencoder_forward.1} parent=0 // pred_check
    _
  $region11: #{autoencoder_forward.1} parent=0 // pred_check_branch
    %25 = sbr.rel (0) target = $region13
  $region12: #{autoencoder_forward.1} parent=0 // pred_region
    _
  $region13: #{autoencoder_forward.1} parent=0 // pred_fallthru
    _
  // Predicated region
  $region14: #{autoencoder_forward.1} parent=0 // pred_check
    _
  $region15: #{autoencoder_forward.1} parent=0 // pred_check_branch
    %27 = sbr.rel (0) target = $region17
  $region16: #{autoencoder_forward.1} parent=0 // pred_region
    _
  $region17: #{autoencoder_forward.1} parent=0 // pred_fallthru
    _
  // Predicated region
  $region18: #{autoencoder_forward.1} parent=0 // pred_check
    _
  $region19: #{autoencoder_forward.1} parent=0 // pred_check_branch
    %29 = sbr.rel (0) target = $region21
  $region20: #{autoencoder_forward.1} parent=0 // pred_region
    _
  $region21: #{autoencoder_forward.1} parent=0 // pred_fallthru
    _
  // Predicated region
  $region22: #{autoencoder_forward.1} parent=0 // pred_check
    _
  $region23: #{autoencoder_forward.1} parent=0 // pred_check_branch
    %31 = sbr.rel (0) target = $region25
  $region24: #{autoencoder_forward.1} parent=0 // pred_region
    _
  $region25: #{autoencoder_forward.1} parent=0 // pred_fallthru
    _
  // Predicated region
  $region26: #{autoencoder_forward.1} parent=0 // pred_check
    _
  $region27: #{autoencoder_forward.1} parent=0 // pred_check_branch
    %33 = sbr.rel (0) target = $region29
  $region28: #{autoencoder_forward.1} parent=0 // pred_region
    _
  $region29: #{autoencoder_forward.1} parent=0 // pred_fallthru
    _
  // Predicated region
  $region30: #{autoencoder_forward.1} parent=0 // pred_check
    _
  $region31: #{autoencoder_forward.1} parent=0 // pred_check_branch
    %35 = sbr.rel (0) target = $region33
  $region32: #{autoencoder_forward.1} parent=0 // pred_region
    _
  $region33: #{autoencoder_forward.1} parent=0 // pred_fallthru
    _
  // Predicated region
  $region34: #{autoencoder_forward.1} parent=0 // pred_check
    _
  $region35: #{autoencoder_forward.1} parent=0 // pred_check_branch
    %37 = sbr.rel (0) target = $region37
  $region36: #{autoencoder_forward.1} parent=0 // pred_region
    _
  $region37: #{autoencoder_forward.1} parent=0 // pred_fallthru
    _
  // Predicated region
  $region38: #{autoencoder_forward.1} parent=0 // pred_check
    _
  $region39: #{autoencoder_forward.1} parent=0 // pred_check_branch
    %39 = sbr.rel (0) target = $region41
  $region40: #{autoencoder_forward.1} parent=0 // pred_region
    _
  $region41: #{autoencoder_forward.1} parent=0 // pred_fallthru
    _
  // Predicated region
  $region42: #{autoencoder_forward.1} parent=0 // pred_check
    _
  $region43: #{autoencoder_forward.1} parent=0 // pred_check_branch
    %41 = sbr.rel (0) target = $region45
  $region44: #{autoencoder_forward.1} parent=0 // pred_region
    _
  $region45: #{autoencoder_forward.1} parent=0 // pred_fallthru
    _
  // Predicated region
  $region46: #{autoencoder_forward.1} parent=0 // pred_check
    _
  $region47: #{autoencoder_forward.1} parent=0 // pred_check_branch
    %43 = sbr.rel (0) target = $region49
  $region48: #{autoencoder_forward.1} parent=0 // pred_region
    _
  $region49: #{autoencoder_forward.1} parent=0 // pred_fallthru
    _
  // Predicated region
  $region50: #{autoencoder_forward.1} parent=0 // pred_check
    _
  $region51: #{autoencoder_forward.1} parent=0 // pred_check_branch
    %45 = sbr.rel (0) target = $region53
  $region52: #{autoencoder_forward.1} parent=0 // pred_region
    _
  $region53: #{autoencoder_forward.1} parent=0 // pred_fallthru
    _
  %v47 = vld [vmem:[%s0] sm:$0xff]
  %v48 = vld [vmem:[%s0 + $0x8] sm:$0xff]
  %v49 = vpack.c.bf16 %v48, %v47
  %v50 = vld [vmem:[%s1] sm:$0x3]
  %v51 = vld [vmem:[%s2] sm:$0x1]
  %v53 = vlaneseq
  %v54 = vshrl.u32 %v53, 7
  %v55 = vsub.s32 0, %v54
  %v56 = vrot.slane %v51, %v55
  %vm58 = vcmask 31744
  %v60 = vsel %vm58, %v49, 0
  %vm62 = vcmask 1041408
  %v64 = vsel %vm62, %v50, 0
  %66 = vmatprep.subr.bf16.mxu0 0
  %67 = vmatpush1.bf16.msra.mxu0 0
  %68 = vmatprep.subr.bf16.mxu0 0
  %69 = vmatpush1.bf16.msra.mxu0 0
  %70 = vmatprep.subr.bf16.mxu0 0
  %71 = vmatpush1.bf16.msra.mxu0 0
  %72 = vmatprep.subr.bf16.mxu0 0
  %73 = vmatpush1.bf16.msra.mxu0 0
  %74 = vmatprep.subr.bf16.mxu0 0
  %75 = vmatpush1.bf16.msra.mxu0 0
  %76 = vmatprep.subr.bf16.mxu0 0
  %77 = vmatpush1.bf16.msra.mxu0 0
  %78 = vmatprep.subr.bf16.mxu0 0
  %79 = vmatpush1.bf16.msra.mxu0 0
  %80 = vmatprep.subr.bf16.mxu0 0
  %81 = vmatpush1.bf16.msra.mxu0 %v64
  %82 = vmatprep.subr.bf16.mxu0 0
  %83 = vmatpush2.bf16.msra.mxu0 0
  %84 = vmatprep.subr.bf16.mxu0 0
  %85 = vmatpush2.bf16.msra.mxu0 0
  %86 = vmatprep.subr.bf16.mxu0 0
  %87 = vmatpush2.bf16.msra.mxu0 0
  %88 = vmatprep.subr.bf16.mxu0 0
  %89 = vmatpush2.bf16.msra.mxu0 0
  %90 = vmatprep.subr.bf16.mxu0 0
  %91 = vmatpush2.bf16.msra.mxu0 0
  %92 = vmatprep.subr.bf16.mxu0 0
  %93 = vmatpush2.bf16.msra.mxu0 0
  %94 = vmatprep.subr.bf16.mxu0 0
  %95 = vmatpush2.bf16.msra.mxu0 0
  %96 = vmatprep.subr.bf16.mxu0 0
  %97 = vmatpush2.bf16.msra.mxu0 0
  %98 = vmatprep.mubr.bf16.mxu0 0
  %99 = vmatmul.mubr.bf16.gmra.mxu0 %v60
  %v100 = vpop.f32.mrf.mxu0
  %v101 = vadd.f32 %v56, %v100
  %v102 = vpop.f32.mrf.mxu0
  %v103 = vpop.f32.mrf.mxu0
  %v104 = vadd.f32 %v56, %v103
  %v105 = vpop.f32.mrf.mxu0
  %106 = vdwg.mxu0
  %v107 = vpack.c.bf16 %v104, %v101
  %v108 = vtanh.bf16.pop %v107
  %v109 = vld [vmem:[%s3] sm:$0xf]
  %v110 = vld [vmem:[%s3 + $0x4] sm:$0xf]
  %v111 = vld [vmem:[%s3 + $0x8] sm:$0xf]
  %v112 = vld [vmem:[%s3 + $0xc] sm:$0xf]
  %v113 = vld [vmem:[%s3 + $0x10] sm:$0xf]
  %v114 = vld [vmem:[%s3 + $0x14] sm:$0xf]
  %v115 = vld [vmem:[%s3 + $0x18] sm:$0xf]
  %v116 = vld [vmem:[%s3 + $0x1c] sm:$0xf]
  %v117 = vld [vmem:[%s4] sm:$0x1]
  %v119 = vlaneseq
  %v120 = vshrl.u32 %v119, 7
  %v121 = vsub.s32 0, %v120
  %v122 = vrot.slane %v117, %v121
  %v132 = vunpack.c.l.b16 %v109
  %v133 = vunpack.c.l.b16 %v110
  %v134 = vunpack.c.l.b16 %v111
  %v135 = vunpack.c.l.b16 %v112
  %v136 = vunpack.c.l.b16 %v113
  %v137 = vunpack.c.l.b16 %v114
  %v138 = vunpack.c.l.b16 %v115
  %v139 = vunpack.c.l.b16 %v116
  %v140 = vpack.c.b16 %v133, %v132
  %v141 = vpack.c.b16 %v135, %v134
  %v142 = vpack.c.b16 %v137, %v136
  %v143 = vpack.c.b16 %v139, %v138
  %vm148 = vcmask 523264
  %v150 = vsel %vm148, %v108, 0
  %152 = vmatprep.subr.bf16.mxu0 0
  %153 = vmatpush1.bf16.msra.mxu0 0
  %154 = vmatprep.subr.bf16.mxu0 0
  %155 = vmatpush1.bf16.msra.mxu0 0
  %156 = vmatprep.subr.bf16.mxu0 0
  %157 = vmatpush1.bf16.msra.mxu0 0
  %158 = vmatprep.subr.bf16.mxu0 0
  %159 = vmatpush1.bf16.msra.mxu0 0
  %160 = vmatprep.subr.bf16.mxu0 0
  %161 = vmatpush1.bf16.msra.mxu0 %v143
  %162 = vmatprep.subr.bf16.mxu0 0
  %163 = vmatpush1.bf16.msra.mxu0 %v142
  %164 = vmatprep.subr.bf16.mxu0 0
  %165 = vmatpush1.bf16.msra.mxu0 %v141
  %166 = vmatprep.subr.bf16.mxu0 0
  %167 = vmatpush1.bf16.msra.mxu0 %v140
  %168 = vmatprep.subr.bf16.mxu0 0
  %169 = vmatpush2.bf16.msra.mxu0 0
  %170 = vmatprep.subr.bf16.mxu0 0
  %171 = vmatpush2.bf16.msra.mxu0 0
  %172 = vmatprep.subr.bf16.mxu0 0
  %173 = vmatpush2.bf16.msra.mxu0 0
  %174 = vmatprep.subr.bf16.mxu0 0
  %175 = vmatpush2.bf16.msra.mxu0 0
  %176 = vmatprep.subr.bf16.mxu0 0
  %177 = vmatpush2.bf16.msra.mxu0 0
  %178 = vmatprep.subr.bf16.mxu0 0
  %179 = vmatpush2.bf16.msra.mxu0 0
  %180 = vmatprep.subr.bf16.mxu0 0
  %181 = vmatpush2.bf16.msra.mxu0 0
  %182 = vmatprep.subr.bf16.mxu0 0
  %183 = vmatpush2.bf16.msra.mxu0 0
  %184 = vmatprep.mubr.bf16.mxu0 0
  %185 = vmatmul.mubr.bf16.gmra.mxu0 %v150
  %v186 = vpop.f32.mrf.mxu0
  %v187 = vadd.f32 %v122, %v186
  %v188 = vpop.f32.mrf.mxu0
  %v189 = vpop.f32.mrf.mxu0
  %v190 = vadd.f32 %v122, %v189
  %v191 = vpop.f32.mrf.mxu0
  %192 = vdwg.mxu0
  %v193 = vpack.c.bf16 %v190, %v187
  %v194 = vtanh.bf16.pop %v193
  %v195 = vld [vmem:[%s5] sm:$0xf]
  %v196 = vld [vmem:[%s5 + $0x4] sm:$0xf]
  %v197 = vld [vmem:[%s5 + $0x8] sm:$0xf]
  %v198 = vld [vmem:[%s5 + $0xc] sm:$0xf]
  %v199 = vld [vmem:[%s5 + $0x10] sm:$0xf]
  %v200 = vld [vmem:[%s5 + $0x14] sm:$0xf]
  %v201 = vld [vmem:[%s5 + $0x18] sm:$0xf]
  %v202 = vld [vmem:[%s5 + $0x1c] sm:$0xf]
  %v203 = vld [vmem:[%s6] sm:$0x1]
  %v205 = vlaneseq
  %v206 = vshrl.u32 %v205, 7
  %v207 = vsub.s32 0, %v206
  %v208 = vrot.slane %v203, %v207
  %v218 = vunpack.c.l.b16 %v195
  %v219 = vunpack.c.l.b16 %v196
  %v220 = vunpack.c.l.b16 %v197
  %v221 = vunpack.c.l.b16 %v198
  %v222 = vunpack.c.l.b16 %v199
  %v223 = vunpack.c.l.b16 %v200
  %v224 = vunpack.c.l.b16 %v201
  %v225 = vunpack.c.l.b16 %v202
  %v226 = vpack.c.b16 %v219, %v218
  %v227 = vpack.c.b16 %v221, %v220
  %v228 = vpack.c.b16 %v223, %v222
  %v229 = vpack.c.b16 %v225, %v224
  %v235 = vsel %vm148, %v194, 0
  %237 = vmatprep.subr.bf16.mxu0 0
  %238 = vmatpush1.bf16.msra.mxu0 0
  %239 = vmatprep.subr.bf16.mxu0 0
  %240 = vmatpush1.bf16.msra.mxu0 0
  %241 = vmatprep.subr.bf16.mxu0 0
  %242 = vmatpush1.bf16.msra.mxu0 0
  %243 = vmatprep.subr.bf16.mxu0 0
  %244 = vmatpush1.bf16.msra.mxu0 0
  %245 = vmatprep.subr.bf16.mxu0 0
  %246 = vmatpush1.bf16.msra.mxu0 %v229
  %247 = vmatprep.subr.bf16.mxu0 0
  %248 = vmatpush1.bf16.msra.mxu0 %v228
  %249 = vmatprep.subr.bf16.mxu0 0
  %250 = vmatpush1.bf16.msra.mxu0 %v227
  %251 = vmatprep.subr.bf16.mxu0 0
  %252 = vmatpush1.bf16.msra.mxu0 %v226
  %253 = vmatprep.subr.bf16.mxu0 0
  %254 = vmatpush2.bf16.msra.mxu0 0
  %255 = vmatprep.subr.bf16.mxu0 0
  %256 = vmatpush2.bf16.msra.mxu0 0
  %257 = vmatprep.subr.bf16.mxu0 0
  %258 = vmatpush2.bf16.msra.mxu0 0
  %259 = vmatprep.subr.bf16.mxu0 0
  %260 = vmatpush2.bf16.msra.mxu0 0
  %261 = vmatprep.subr.bf16.mxu0 0
  %262 = vmatpush2.bf16.msra.mxu0 0
  %263 = vmatprep.subr.bf16.mxu0 0
  %264 = vmatpush2.bf16.msra.mxu0 0
  %265 = vmatprep.subr.bf16.mxu0 0
  %266 = vmatpush2.bf16.msra.mxu0 0
  %267 = vmatprep.subr.bf16.mxu0 0
  %268 = vmatpush2.bf16.msra.mxu0 0
  %269 = vmatprep.mubr.bf16.mxu0 0
  %270 = vmatmul.mubr.bf16.gmra.mxu0 %v235
  %v271 = vpop.f32.mrf.mxu0
  %v272 = vadd.f32 %v208, %v271
  %v273 = vpop.f32.mrf.mxu0
  %v274 = vpop.f32.mrf.mxu0
  %v275 = vadd.f32 %v208, %v274
  %v276 = vpop.f32.mrf.mxu0
  %277 = vdwg.mxu0
  %v278 = vlaneseq
  %v279 = vand.u32 %v278, 127
  %vm280 = vcmp.lt.s32.totalorder %v279, 0
  %v281 = vsub.s32 0, %v279
  %v282 = vsel %vm280, %v281, %v279
  %v283 = vshrl.u32 %v282, 1
  %v284 = vand.u32 %v282, 1
  %v285 = vsub.s32 0, %v284
  %v286 = vsel %vm280, %v285, %v284
  %vm287 = vcmp.ne.s32.totalorder %v286, 0
  %vm288 = vcmp.lt.s32.totalorder %v286, 0
  %vm289 = vmand %vm288, %vm287
  %v290 = vadd.s32 %v286, 2
  %v291 = vsel %vm289, %v290, %v286
  %vm292 = vcmp.eq.s32.totalorder %v291, 0
  %v293 = vsel %vm292, %v47, %v272
  %v294 = vsel %vm292, %v48, %v275
  %v295 = vpack.c.bf16 %v294, %v293
  %v296 = vld [vmem:[%s7] sm:$0x3]
  %v297 = vld [vmem:[%s8] sm:$0x1]
  %v299 = vlaneseq
  %v300 = vshrl.u32 %v299, 7
  %v301 = vsub.s32 0, %v300
  %v302 = vrot.slane %v297, %v301
  %v305 = vsel %vm58, %v295, 0
  %v308 = vsel %vm62, %v296, 0
  %310 = vmatprep.subr.bf16.mxu0 0
  %311 = vmatpush1.bf16.msra.mxu0 0
  %312 = vmatprep.subr.bf16.mxu0 0
  %313 = vmatpush1.bf16.msra.mxu0 0
  %314 = vmatprep.subr.bf16.mxu0 0
  %315 = vmatpush1.bf16.msra.mxu0 0
  %316 = vmatprep.subr.bf16.mxu0 0
  %317 = vmatpush1.bf16.msra.mxu0 0
  %318 = vmatprep.subr.bf16.mxu0 0
  %319 = vmatpush1.bf16.msra.mxu0 0
  %320 = vmatprep.subr.bf16.mxu0 0
  %321 = vmatpush1.bf16.msra.mxu0 0
  %322 = vmatprep.subr.bf16.mxu0 0
  %323 = vmatpush1.bf16.msra.mxu0 0
  %324 = vmatprep.subr.bf16.mxu0 0
  %325 = vmatpush1.bf16.msra.mxu0 %v308
  %326 = vmatprep.subr.bf16.mxu0 0
  %327 = vmatpush2.bf16.msra.mxu0 0
  %328 = vmatprep.subr.bf16.mxu0 0
  %329 = vmatpush2.bf16.msra.mxu0 0
  %330 = vmatprep.subr.bf16.mxu0 0
  %331 = vmatpush2.bf16.msra.mxu0 0
  %332 = vmatprep.subr.bf16.mxu0 0
  %333 = vmatpush2.bf16.msra.mxu0 0
  %334 = vmatprep.subr.bf16.mxu0 0
  %335 = vmatpush2.bf16.msra.mxu0 0
  %336 = vmatprep.subr.bf16.mxu0 0
  %337 = vmatpush2.bf16.msra.mxu0 0
  %338 = vmatprep.subr.bf16.mxu0 0
  %339 = vmatpush2.bf16.msra.mxu0 0
  %340 = vmatprep.subr.bf16.mxu0 0
  %341 = vmatpush2.bf16.msra.mxu0 0
  %342 = vmatprep.mubr.bf16.mxu0 0
  %343 = vmatmul.mubr.bf16.gmra.mxu0 %v305
  %v344 = vpop.f32.mrf.mxu0
  %v345 = vadd.f32 %v302, %v344
  %v346 = vpop.f32.mrf.mxu0
  %v347 = vpop.f32.mrf.mxu0
  %v348 = vadd.f32 %v302, %v347
  %v349 = vpop.f32.mrf.mxu0
  %350 = vdwg.mxu0
  %v351 = vpack.c.bf16 %v348, %v345
  %v352 = vtanh.bf16.pop %v351
  %v353 = vld [vmem:[%s9] sm:$0xf]
  %v354 = vld [vmem:[%s9 + $0x4] sm:$0xf]
  %v355 = vld [vmem:[%s9 + $0x8] sm:$0xf]
  %v356 = vld [vmem:[%s9 + $0xc] sm:$0xf]
  %v357 = vld [vmem:[%s9 + $0x10] sm:$0xf]
  %v358 = vld [vmem:[%s9 + $0x14] sm:$0xf]
  %v359 = vld [vmem:[%s9 + $0x18] sm:$0xf]
  %v360 = vld [vmem:[%s9 + $0x1c] sm:$0xf]
  %v361 = vld [vmem:[%s10] sm:$0x1]
  %v363 = vlaneseq
  %v364 = vshrl.u32 %v363, 7
  %v365 = vsub.s32 0, %v364
  %v366 = vrot.slane %v361, %v365
  %v376 = vunpack.c.l.b16 %v353
  %v377 = vunpack.c.l.b16 %v354
  %v378 = vunpack.c.l.b16 %v355
  %v379 = vunpack.c.l.b16 %v356
  %v380 = vunpack.c.l.b16 %v357
  %v381 = vunpack.c.l.b16 %v358
  %v382 = vunpack.c.l.b16 %v359
  %v383 = vunpack.c.l.b16 %v360
  %v384 = vpack.c.b16 %v377, %v376
  %v385 = vpack.c.b16 %v379, %v378
  %v386 = vpack.c.b16 %v381, %v380
  %v387 = vpack.c.b16 %v383, %v382
  %v393 = vsel %vm148, %v352, 0
  %395 = vmatprep.subr.bf16.mxu0 0
  %396 = vmatpush1.bf16.msra.mxu0 0
  %397 = vmatprep.subr.bf16.mxu0 0
  %398 = vmatpush1.bf16.msra.mxu0 0
  %399 = vmatprep.subr.bf16.mxu0 0
  %400 = vmatpush1.bf16.msra.mxu0 0
  %401 = vmatprep.subr.bf16.mxu0 0
  %402 = vmatpush1.bf16.msra.mxu0 0
  %403 = vmatprep.subr.bf16.mxu0 0
  %404 = vmatpush1.bf16.msra.mxu0 %v387
  %405 = vmatprep.subr.bf16.mxu0 0
  %406 = vmatpush1.bf16.msra.mxu0 %v386
  %407 = vmatprep.subr.bf16.mxu0 0
  %408 = vmatpush1.bf16.msra.mxu0 %v385
  %409 = vmatprep.subr.bf16.mxu0 0
  %410 = vmatpush1.bf16.msra.mxu0 %v384
  %411 = vmatprep.subr.bf16.mxu0 0
  %412 = vmatpush2.bf16.msra.mxu0 0
  %413 = vmatprep.subr.bf16.mxu0 0
  %414 = vmatpush2.bf16.msra.mxu0 0
  %415 = vmatprep.subr.bf16.mxu0 0
  %416 = vmatpush2.bf16.msra.mxu0 0
  %417 = vmatprep.subr.bf16.mxu0 0
  %418 = vmatpush2.bf16.msra.mxu0 0
  %419 = vmatprep.subr.bf16.mxu0 0
  %420 = vmatpush2.bf16.msra.mxu0 0
  %421 = vmatprep.subr.bf16.mxu0 0
  %422 = vmatpush2.bf16.msra.mxu0 0
  %423 = vmatprep.subr.bf16.mxu0 0
  %424 = vmatpush2.bf16.msra.mxu0 0
  %425 = vmatprep.subr.bf16.mxu0 0
  %426 = vmatpush2.bf16.msra.mxu0 0
  %427 = vmatprep.mubr.bf16.mxu0 0
  %428 = vmatmul.mubr.bf16.gmra.mxu0 %v393
  %v429 = vpop.f32.mrf.mxu0
  %v430 = vadd.f32 %v366, %v429
  %v431 = vpop.f32.mrf.mxu0
  %v432 = vpop.f32.mrf.mxu0
  %v433 = vadd.f32 %v366, %v432
  %v434 = vpop.f32.mrf.mxu0
  %435 = vdwg.mxu0
  %v436 = vpack.c.bf16 %v433, %v430
  %v437 = vtanh.bf16.pop %v436
  %v438 = vld [vmem:[%s11] sm:$0xf]
  %v439 = vld [vmem:[%s11 + $0x4] sm:$0xf]
  %v440 = vld [vmem:[%s11 + $0x8] sm:$0xf]
  %v441 = vld [vmem:[%s11 + $0xc] sm:$0xf]
  %v442 = vld [vmem:[%s11 + $0x10] sm:$0xf]
  %v443 = vld [vmem:[%s11 + $0x14] sm:$0xf]
  %v444 = vld [vmem:[%s11 + $0x18] sm:$0xf]
  %v445 = vld [vmem:[%s11 + $0x1c] sm:$0xf]
  %v446 = vld [vmem:[%s12] sm:$0x1]
  %v448 = vlaneseq
  %v449 = vshrl.u32 %v448, 7
  %v450 = vsub.s32 0, %v449
  %v451 = vrot.slane %v446, %v450
  %v461 = vunpack.c.l.b16 %v438
  %v462 = vunpack.c.l.b16 %v439
  %v463 = vunpack.c.l.b16 %v440
  %v464 = vunpack.c.l.b16 %v441
  %v465 = vunpack.c.l.b16 %v442
  %v466 = vunpack.c.l.b16 %v443
  %v467 = vunpack.c.l.b16 %v444
  %v468 = vunpack.c.l.b16 %v445
  %v469 = vpack.c.b16 %v462, %v461
  %v470 = vpack.c.b16 %v464, %v463
  %v471 = vpack.c.b16 %v466, %v465
  %v472 = vpack.c.b16 %v468, %v467
  %v478 = vsel %vm148, %v437, 0
  %480 = vmatprep.subr.bf16.mxu0 0
  %481 = vmatpush1.bf16.msra.mxu0 0
  %482 = vmatprep.subr.bf16.mxu0 0
  %483 = vmatpush1.bf16.msra.mxu0 0
  %484 = vmatprep.subr.bf16.mxu0 0
  %485 = vmatpush1.bf16.msra.mxu0 0
  %486 = vmatprep.subr.bf16.mxu0 0
  %487 = vmatpush1.bf16.msra.mxu0 0
  %488 = vmatprep.subr.bf16.mxu0 0
  %489 = vmatpush1.bf16.msra.mxu0 %v472
  %490 = vmatprep.subr.bf16.mxu0 0
  %491 = vmatpush1.bf16.msra.mxu0 %v471
  %492 = vmatprep.subr.bf16.mxu0 0
  %493 = vmatpush1.bf16.msra.mxu0 %v470
  %494 = vmatprep.subr.bf16.mxu0 0
  %495 = vmatpush1.bf16.msra.mxu0 %v469
  %496 = vmatprep.subr.bf16.mxu0 0
  %497 = vmatpush2.bf16.msra.mxu0 0
  %498 = vmatprep.subr.bf16.mxu0 0
  %499 = vmatpush2.bf16.msra.mxu0 0
  %500 = vmatprep.subr.bf16.mxu0 0
  %501 = vmatpush2.bf16.msra.mxu0 0
  %502 = vmatprep.subr.bf16.mxu0 0
  %503 = vmatpush2.bf16.msra.mxu0 0
  %504 = vmatprep.subr.bf16.mxu0 0
  %505 = vmatpush2.bf16.msra.mxu0 0
  %506 = vmatprep.subr.bf16.mxu0 0
  %507 = vmatpush2.bf16.msra.mxu0 0
  %508 = vmatprep.subr.bf16.mxu0 0
  %509 = vmatpush2.bf16.msra.mxu0 0
  %510 = vmatprep.subr.bf16.mxu0 0
  %511 = vmatpush2.bf16.msra.mxu0 0
  %512 = vmatprep.mubr.bf16.mxu0 0
  %513 = vmatmul.mubr.bf16.gmra.mxu0 %v478
  %v514 = vpop.f32.mrf.mxu0
  %v515 = vadd.f32 %v451, %v514
  %v516 = vpop.f32.mrf.mxu0
  %v517 = vpop.f32.mrf.mxu0
  %v518 = vadd.f32 %v451, %v517
  %v519 = vpop.f32.mrf.mxu0
  %520 = vdwg.mxu0
  %521 = vst.msk [vmem:[%s13] sm:$0xff] %vm58, %v293
  %522 = vst.msk [vmem:[%s13 + $0x8] sm:$0xff] %vm58, %v294
  %523 = vst.msk [vmem:[%s14] sm:$0xff] %vm58, %v515
  %524 = vst.msk [vmem:[%s14 + $0x8] sm:$0xff] %vm58, %v518
  // Predicated region
  $region54: #{autoencoder_forward.1} parent=0 // pred_check
    _
  $region55: #{autoencoder_forward.1} parent=0 // pred_check_branch
    %526 = sbr.rel (0) target = $region57
  $region56: #{autoencoder_forward.1} parent=0 // pred_region
    _
  $region57: #{autoencoder_forward.1} parent=0 // pred_fallthru
    _
  // Predicated region
  $region58: #{autoencoder_forward.1} parent=0 // pred_check
    _
  $region59: #{autoencoder_forward.1} parent=0 // pred_check_branch
    %528 = sbr.rel (0) target = $region61
  $region60: #{autoencoder_forward.1} parent=0 // pred_region
    _
  $region61: #{autoencoder_forward.1} parent=0 // pred_fallthru
    _
  // Predicated region
  $region62: #{autoencoder_forward.1} parent=0 // pred_check
    _
  $region63: #{autoencoder_forward.1} parent=0 // pred_check_branch
    %530 = sbr.rel (0) target = $region65
  $region64: #{autoencoder_forward.1} parent=0 // pred_region
    _
  $region65: #{autoencoder_forward.1} parent=0 // pred_fallthru
    _
  // Predicated region
  $region66: #{autoencoder_forward.1} parent=0 // pred_check
    _
  $region67: #{autoencoder_forward.1} parent=0 // pred_check_branch
    %532 = sbr.rel (0) target = $region69
  $region68: #{autoencoder_forward.1} parent=0 // pred_region
    _
  $region69: #{autoencoder_forward.1} parent=0 // pred_fallthru
    _

</llo_original>
